<compile_context>
chip_gen: v7x
topology: tpu7x:2x2x1
jax: 0.10.0
libtpu: 0.0.40
codegen_flags: <defaults>
</compile_context>

<pallas_src>
import math

import jax
import jax.numpy as jnp
from jax.experimental import pallas as pl
from jax.experimental.pallas import tpu as pltpu


def _pos_enc_kernel(x_ref, freq_ref, phase_ref, o_ref):
    # x_ref / o_ref block: [tile_rows, B*D]; freq_ref / phase_ref: [1, B*D]
    rows, bd = x_ref.shape

    # Absolute sequence position of each row in this block (f32, exact for
    # positions < 2^24, far beyond max_len=10000).
    base = (pl.program_id(0) * rows).astype(jnp.float32)
    pos = jax.lax.broadcasted_iota(jnp.int32, (rows, bd), 0).astype(jnp.float32) + base

    # angle = pos * freq(channel) + phase(channel); phase is 0 for even
    # channels (sin) and pi/2 for odd channels (cos) -> one sin call total.
    angle = pos * freq_ref[...] + phase_ref[...]
    pe = jnp.sin(angle)

    o_ref[...] = (x_ref[...].astype(jnp.float32) + pe).astype(o_ref.dtype)


def _pick_tile_rows(S: int, row_bytes: int, target_bytes: int) -> int:
    """Largest row-tile such that one block is ~target_bytes, multiple of 8."""
    if S * row_bytes <= target_bytes:
        return S  # single block covers the whole array (block dim == array dim)
    max_rows = max(8, (target_bytes // max(row_bytes, 1)) // 8 * 8)
    return int(min(max_rows, S))


def positional_encoding(x: jax.Array, *, target_block_bytes: int = 4 << 20) -> jax.Array:
    """x: [S, B, D] -> [S, B, D] with sinusoidal positional encoding added."""
    S, B, D = x.shape
    assert D % 2 == 0, "d_model must be even (matches the PyTorch module)"
    BD = B * D

    # Free, contiguous reshape: lane index l = b*D + d.
    x2d = x.reshape(S, BD)

    # Tiny grid-invariant tables (stay resident in VMEM across the grid).
    d_idx = jnp.arange(D)
    two_i = ((d_idx // 2) * 2).astype(jnp.float32)
    freq_d = jnp.exp(two_i * (-math.log(10000.0) / float(D)))                 # [D]
    phase_d = jnp.where(d_idx % 2 == 0, 0.0, math.pi / 2.0).astype(jnp.float32)
    freq = jnp.tile(freq_d, (B,)).reshape(1, BD)                              # [1, B*D]
    phase = jnp.tile(phase_d, (B,)).reshape(1, BD)                            # [1, B*D]

    row_bytes = BD * x.dtype.itemsize
    tile_rows = _pick_tile_rows(S, row_bytes, target_block_bytes)
    grid = (pl.cdiv(S, tile_rows),)

    out2d = pl.pallas_call(
        _pos_enc_kernel,
        out_shape=jax.ShapeDtypeStruct((S, BD), x.dtype),
        grid=grid,
        in_specs=[
            pl.BlockSpec((tile_rows, BD), lambda i: (i, 0)),  # x block
            pl.BlockSpec((1, BD), lambda i: (0, 0)),          # freq (resident)
            pl.BlockSpec((1, BD), lambda i: (0, 0)),          # phase (resident)
        ],
        out_specs=pl.BlockSpec((tile_rows, BD), lambda i: (i, 0)),
        compiler_params=pltpu.CompilerParams(
            dimension_semantics=("parallel",),
            vmem_limit_bytes=32 << 20,
        ),
    )(x2d, freq, phase)

    return out2d.reshape(S, B, D)


def _reference(x: jax.Array) -> jax.Array:
    """Pure-JAX reference mirroring the PyTorch buffer construction."""
    S, B, D = x.shape
    position = jnp.arange(S, dtype=jnp.float32)[:, None]                      # [S, 1]
    div_term = jnp.exp(
        jnp.arange(0, D, 2, dtype=jnp.float32) * (-math.log(10000.0) / D)
    )                                                                         # [D/2]
    pe = jnp.zeros((S, D), dtype=jnp.float32)
    pe = pe.at[:, 0::2].set(jnp.sin(position * div_term))
    pe = pe.at[:, 1::2].set(jnp.cos(position * div_term))
    return x + pe[:, None, :]                                                 # broadcast over batch


if __name__ == "__main__":
    key = jax.random.PRNGKey(0)
    S, B, D = 16, 4, 32  # [sequence length, batch size, embed dim]
    x = jax.random.normal(key, (S, B, D), dtype=jnp.float32)

    out = jax.block_until_ready(positional_encoding(x))

    ref = _reference(x)
    assert out.shape == (S, B, D)
    err = float(jnp.max(jnp.abs(out - ref)))
    assert err < 2e-5, err
    print("KERNEL_OK")
</pallas_src>

<mosaic_0001>
module attributes {stable_mosaic.version = 11 : i64} {
  func.func @_pos_enc_kernel(%arg0: i32, %arg1: memref<16x128xf32, #tpu.memory_space<vmem>>, %arg2: memref<1x128xf32, #tpu.memory_space<vmem>>, %arg3: memref<1x128xf32, #tpu.memory_space<vmem>>, %arg4: memref<16x128xf32, #tpu.memory_space<vmem>>) attributes {dimension_semantics = [#tpu.dimension_semantics<parallel>], iteration_bounds = array<i64: 1>, scalar_prefetch = 0 : i64, scratch_operands = 0 : i64, tpu.core_type = #tpu.core_type<tc>, window_params = [{transform_indices = @transform_0, window_bounds = array<i64: 16, 128>}, {pipeline_mode = #tpu.pipeline_mode<synchronous>, transform_indices = @transform_1, window_bounds = array<i64: 1, 128>}, {pipeline_mode = #tpu.pipeline_mode<synchronous>, transform_indices = @transform_2, window_bounds = array<i64: 1, 128>}, {transform_indices = @transform_3, window_bounds = array<i64: 16, 128>}]} {
    %c16_i32 = arith.constant 16 : i32
    %0 = arith.muli %arg0, %c16_i32 : i32
    %1 = arith.sitofp %0 : i32 to f32
    %2 = tpu.iota {dimensions = array<i32: 0>} : vector<16x128xi32>
    %3 = arith.sitofp %2 : vector<16x128xi32> to vector<16x128xf32>
    %4 = vector.broadcast %1 : f32 to vector<16x128xf32>
    %5 = arith.addf %3, %4 : vector<16x128xf32>
    %c0 = arith.constant 0 : index
    %c0_0 = arith.constant 0 : index
    %6 = vector.load %arg2[%c0, %c0_0] : memref<1x128xf32, #tpu.memory_space<vmem>>, vector<1x128xf32>
    %7 = vector.broadcast %6 : vector<1x128xf32> to vector<16x128xf32>
    %8 = arith.mulf %5, %7 : vector<16x128xf32>
    %c0_1 = arith.constant 0 : index
    %c0_2 = arith.constant 0 : index
    %9 = vector.load %arg3[%c0_1, %c0_2] : memref<1x128xf32, #tpu.memory_space<vmem>>, vector<1x128xf32>
    %10 = vector.broadcast %9 : vector<1x128xf32> to vector<16x128xf32>
    %11 = arith.addf %8, %10 : vector<16x128xf32>
    %12 = math.sin %11 : vector<16x128xf32>
    %c0_3 = arith.constant 0 : index
    %c0_4 = arith.constant 0 : index
    %13 = vector.load %arg1[%c0_3, %c0_4] : memref<16x128xf32, #tpu.memory_space<vmem>>, vector<16x128xf32>
    %14 = arith.addf %13, %12 : vector<16x128xf32>
    %c0_5 = arith.constant 0 : index
    %c0_6 = arith.constant 0 : index
    %15 = vector.load %arg4[%c0_5, %c0_6] : memref<16x128xf32, #tpu.memory_space<vmem>>, vector<16x128xf32>
    tpu.vector_store %arg4[%c0_5, %c0_6], %14 {strides = array<i32>} : memref<16x128xf32, #tpu.memory_space<vmem>>, vector<16x128xf32>,
    return
  }
  func.func @transform_0(%arg0: i32) -> (i32, i32) {
    %c0_i32 = arith.constant 0 : i32
    %c0_i32_0 = arith.constant 0 : i32
    return %arg0, %c0_i32 : i32, i32
  }
  func.func @transform_1(%arg0: i32) -> (i32, i32) {
    %c0_i32 = arith.constant 0 : i32
    %c0_i32_0 = arith.constant 0 : i32
    %c0_i32_1 = arith.constant 0 : i32
    return %c0_i32, %c0_i32_0 : i32, i32
  }
  func.func @transform_2(%arg0: i32) -> (i32, i32) {
    %c0_i32 = arith.constant 0 : i32
    %c0_i32_0 = arith.constant 0 : i32
    %c0_i32_1 = arith.constant 0 : i32
    return %c0_i32, %c0_i32_0 : i32, i32
  }
  func.func @transform_3(%arg0: i32) -> (i32, i32) {
    %c0_i32 = arith.constant 0 : i32
    %c0_i32_0 = arith.constant 0 : i32
    return %arg0, %c0_i32 : i32, i32
  }
}

</mosaic_0001>

<llo_original>
// kernel: tpu_custom_call.1
$region0: #{tpu_custom_call.1}
  #allocation0 [shape = 'u32[]', space=smem, size = 0x4, offset = 0x4, fixed_abs, tag = 'smem constant byte address 0x4 - core index']
  #allocation1 [shape = 'u32[144,128]{1,0:T(1,128)}', space=vmem, size = 0x12000, scoped, tag = 'internal scratch']
  %s0 = inlined_call_operand.hbm [shape: f32[16,128], index: 0, kind: input, shape index: {}]
  %s1 = inlined_call_operand.vmem [shape: f32[1,128], index: 1, kind: input, shape index: {}]
  %s2 = inlined_call_operand.vmem [shape: f32[1,128], index: 2, kind: input, shape index: {}]
  %s3 = inlined_call_operand.hbm [shape: f32[16,128], index: 3, kind: output, shape index: {}]
  %s4 = sld [smem:[#allocation0]]
  $region26: #{tpu_custom_call.1} parent=0
    _
  %s6 = ssub.s32 1, %s4
  %s7 = scalar_select 0, %s6, %s4
  $region1: #{tpu_custom_call.1} parent=0
    #allocation2 [shape = 'u8[8192]{0}', space=vmem, size = 0x2000, scoped, tag = 'input window, operand 0, single buffered']
    #allocation3 [shape = 's32[1]{0}', space=sflag, size = 0x4, scoped, tag = 'scoped memory for tpu_custom_call.1']
    #allocation4 [shape = 's32[1]{0}', space=sflag, size = 0x4, scoped, tag = 'scoped memory for tpu_custom_call.1']
    #allocation5 [shape = 'u8[8192]{0}', space=vmem, size = 0x2000, scoped, tag = 'output window, operand 0, single buffered']
    %8 = vsyncpa [#allocation3], 0
    %9 = vsyncpa [#allocation4], 0
    // Predicated region
    $region2: #{tpu_custom_call.1} parent=1 // pred_check
      _
    $region3: #{tpu_custom_call.1} parent=1 // pred_check_branch
      %11 = sbr.rel (0) target = $region5
    $region4: #{tpu_custom_call.1} parent=1 // pred_region
      %s13 = ssub.s32 256, 256
      %14 = vsyncadd [#allocation3], %s13
      %s15 = sshll.u32 [#allocation2], 4
      %s16 = int_to_ptr.vmem [resolvable:$true] %s15
      %21 = dma.hbm_to_vmem [thread:$0]  %s0, 256, %s16, [#allocation3], 128, 128, 8
    $region5: #{tpu_custom_call.1} parent=1 // pred_fallthru
      _
    // Predicated region
    $region6: #{tpu_custom_call.1} parent=1 // pred_check
      _
    $region7: #{tpu_custom_call.1} parent=1 // pred_check_branch
      %23 = sbr.rel (0) target = $region9
    $region8: #{tpu_custom_call.1} parent=1 // pred_region
      _
    $region9: #{tpu_custom_call.1} parent=1 // pred_fallthru
      _
    // Predicated region
    $region10: #{tpu_custom_call.1} parent=1 // pred_check
      _
    $region11: #{tpu_custom_call.1} parent=1 // pred_check_branch
      %25 = sbr.rel (0) target = $region13
    $region12: #{tpu_custom_call.1} parent=1 // pred_region
      _
    $region13: #{tpu_custom_call.1} parent=1 // pred_fallthru
      _
    // Predicated region
    $region14: #{tpu_custom_call.1} parent=1 // pred_check
      _
    $region15: #{tpu_custom_call.1} parent=1 // pred_check_branch
      %27 = sbr.rel (0) target = $region17
    $region16: #{tpu_custom_call.1} parent=1 // pred_region
      %28 = dma.done [#allocation3], 256
    $region17: #{tpu_custom_call.1} parent=1 // pred_fallthru
      _
    %s29 = smul.u32 0, 16
    %s30 = scvt.s32.f32 %s29
    %v31 = vlaneseq
    %v32 = vshrl.u32 %v31, 7
    %v33 = vadd.s32 %v32, 8
    %v34 = vcvt.s32.f32 %v32
    %v35 = vcvt.s32.f32 %v33
    %v36 = vstv %s30
    %v37 = vadd.f32 %v34, %v36
    %v38 = vadd.f32 %v35, %v36
    %v39 = vld [vmem:[%s1] sm:$0x1]
    %v41 = vlaneseq
    %v42 = vshrl.u32 %v41, 7
    %v43 = vsub.s32 0, %v42
    %v44 = vrot.slane %v39, %v43
    %v46 = vmul.f32 %v37, %v44
    %v47 = vmul.f32 %v38, %v44
    %v48 = vld [vmem:[%s2] sm:$0x1]
    %v50 = vlaneseq
    %v51 = vshrl.u32 %v50, 7
    %v52 = vsub.s32 0, %v51
    %v53 = vrot.slane %v48, %v52
    %v55 = vadd.f32 %v46, %v53
    %v56 = vadd.f32 %v47, %v53
    %v57 = vand.u32 2147483647, %v55
    %vm58 = vcmp.le.f32.partialorder %v57, 0.7853982
    %vm59 = vcmp.lt.s32.totalorder %v55, 0
    %v60 = vand.u32 %v55, 2139095040
    %v61 = vshrl.u32 %v60, 23
    %v62 = vsub.s32 %v61, 127
    %v63 = vand.u32 2147483647, %v55
    %v64 = vand.u32 %v63, 8388607
    %v65 = vor.u32 %v64, 8388608
    %v66 = vsub.s32 0, %v65
    %v67 = vadd.s32 %v62, 1
    %vm68 = vcmp.gt.s32.totalorder %v67, 0
    %v69 = vsel %vm68, %v67, 0
    %v70 = vshrl.u32 %v69, 5
    %v71 = vand.u32 %v69, 31
    %v72 = vsub.s32 32, %v71
    %v73 = vshrl.u32 683565275, %v72
    %v74 = vshll.u32 683565275, %v71
    %v75 = vshrl.u32 2475754826, %v72
    %v76 = vor.u32 %v74, %v75
    %v77 = vshll.u32 2475754826, %v71
    %v78 = vshrl.u32 2131351028, %v72
    %v79 = vor.u32 %v77, %v78
    %v80 = vshll.u32 2131351028, %v71
    %v81 = vshrl.u32 2102212464, %v72
    %v82 = vor.u32 %v80, %v81
    %v83 = vshll.u32 2102212464, %v71
    %v84 = vshrl.u32 920167782, %v72
    %v85 = vor.u32 %v83, %v84
    %v86 = vshll.u32 920167782, %v71
    %v87 = vshrl.u32 1326507024, %v72
    %v88 = vor.u32 %v86, %v87
    %vm89 = vcmp.lt.s32.totalorder %v70, 1
    %vm90 = vcmp.lt.s32.totalorder %v70, 2
    %vm91 = vcmp.lt.s32.totalorder %v70, 3
    %vm92 = vcmp.lt.s32.totalorder %v70, 4
    %v93 = vsel %vm89, %v73, %v76
    %v94 = vsel %vm92, %v82, 2102212464
    %v95 = vsel %vm91, %v79, %v94
    %v96 = vsel %vm90, %v93, %v95
    %v97 = vsel %vm89, %v76, %v79
    %v98 = vsel %vm92, %v85, 920167782
    %v99 = vsel %vm91, %v82, %v98
    %v100 = vsel %vm90, %v97, %v99
    %v101 = vsel %vm89, %v79, %v82
    %v102 = vsel %vm92, %v88, 1326507024
    %v103 = vsel %vm91, %v85, %v102
    %v104 = vsel %vm90, %v101, %v103
    %v105 = vshll.u32 %v65, 8
    %v106 = vmul.u32.u64.compose %v105, %v104
    %v107 = vextract.low.u32 %v106
    %v108 = vextract.high.u32 %v106
    %v109 = vmul.u32.u64.compose %v105, %v100
    %v110 = vextract.low.u32 %v109
    %v111 = vextract.high.u32 %v109
    %v112 = vmul.u32 %v105, %v96
    %v113 = vadd.s32 %v108, %v110
    %vm114 = vc.u32 %v108, %v110
    %v115 = vadd.s32 %v111, 1
    %v116 = vsel %vm114, %v115, %v111
    %v117 = vadd.s32 %v112, %v116
    %v118 = vadd.s32 %v117, 536870912
    %v119 = vshrl.u32 %v118, 30
    %v120 = vshll.u32 %v119, 30
    %v121 = vsub.s32 %v117, %v120
    %vm122 = vcmp.lt.s32.totalorder %v121, 0
    %v123 = vsub.s32 0, %v121
    %v124 = vsel %vm122, %v123, %v121
    %v125 = vclz %v124
    %v126 = vsub.s32 %v125, 2
    %vm127 = vcmp.gt.s32.totalorder 0, %v126
    %v128 = vsel %vm127, 0, %v126
    %v129 = vsub.s32 32, %v128
    %v130 = vshll.u32 %v121, %v128
    %v131 = vshrl.u32 %v113, %v129
    %v132 = vor.u32 %v130, %v131
    %v133 = vsub.s32 4294967266, %v128
    %v134 = vadd.s32 %v133, 127
    %v135 = vshll.u32 %v134, 23
    %v136 = vor.u32 4788187, %v135
    %v137 = vand.u32 2147483647, %v136
    %v139 = vcvt.s32.f32 %v132
    %v140 = vmul.f32 %v139, %v137
    %v141 = vxor.u32 %v140, 2147483648
    %v142 = vsel %vm59, %v141, %v140
    %v143 = vsub.s32 4, %v119
    %v144 = vsel %vm59, %v143, %v119
    %v145 = vsel %vm58, %v55, %v142
    %v146 = vsel %vm58, 0, %v144
    %v147 = vcosq.f32.pop %v145
    %v148 = vsinq.f32.pop %v145
    %vm149 = vweird.f32 %v55
    %v150 = vadd.s32 %v146, 3
    %v151 = vand.u32 %v150, 3
    %vm152 = vcmp.lt.s32.totalorder %v151, 2
    %vm153 = vcmp.eq.s32.totalorder %v151, 0
    %v154 = vxor.u32 %v148, 2147483648
    %v155 = vsel %vm153, %v147, %v154
    %vm156 = vcmp.eq.s32.totalorder %v151, 2
    %v157 = vxor.u32 %v147, 2147483648
    %v158 = vsel %vm156, %v157, %v148
    %v159 = vsel %vm152, %v155, %v158
    %v160 = vsel %vm149, nan, %v159
    %v161 = vand.u32 2147483647, %v56
    %vm162 = vcmp.le.f32.partialorder %v161, 0.7853982
    %vm163 = vcmp.lt.s32.totalorder %v56, 0
    %v164 = vand.u32 %v56, 2139095040
    %v165 = vshrl.u32 %v164, 23
    %v166 = vsub.s32 %v165, 127
    %v167 = vand.u32 2147483647, %v56
    %v168 = vand.u32 %v167, 8388607
    %v169 = vor.u32 %v168, 8388608
    %v170 = vsub.s32 0, %v169
    %v171 = vadd.s32 %v166, 1
    %vm172 = vcmp.gt.s32.totalorder %v171, 0
    %v173 = vsel %vm172, %v171, 0
    %v174 = vshrl.u32 %v173, 5
    %v175 = vand.u32 %v173, 31
    %v176 = vsub.s32 32, %v175
    %v177 = vshrl.u32 683565275, %v176
    %v178 = vshll.u32 683565275, %v175
    %v179 = vshrl.u32 2475754826, %v176
    %v180 = vor.u32 %v178, %v179
    %v181 = vshll.u32 2475754826, %v175
    %v182 = vshrl.u32 2131351028, %v176
    %v183 = vor.u32 %v181, %v182
    %v184 = vshll.u32 2131351028, %v175
    %v185 = vshrl.u32 2102212464, %v176
    %v186 = vor.u32 %v184, %v185
    %v187 = vshll.u32 2102212464, %v175
    %v188 = vshrl.u32 920167782, %v176
    %v189 = vor.u32 %v187, %v188
    %v190 = vshll.u32 920167782, %v175
    %v191 = vshrl.u32 1326507024, %v176
    %v192 = vor.u32 %v190, %v191
    %vm193 = vcmp.lt.s32.totalorder %v174, 1
    %vm194 = vcmp.lt.s32.totalorder %v174, 2
    %vm195 = vcmp.lt.s32.totalorder %v174, 3
    %vm196 = vcmp.lt.s32.totalorder %v174, 4
    %v197 = vsel %vm193, %v177, %v180
    %v198 = vsel %vm196, %v186, 2102212464
    %v199 = vsel %vm195, %v183, %v198
    %v200 = vsel %vm194, %v197, %v199
    %v201 = vsel %vm193, %v180, %v183
    %v202 = vsel %vm196, %v189, 920167782
    %v203 = vsel %vm195, %v186, %v202
    %v204 = vsel %vm194, %v201, %v203
    %v205 = vsel %vm193, %v183, %v186
    %v206 = vsel %vm196, %v192, 1326507024
    %v207 = vsel %vm195, %v189, %v206
    %v208 = vsel %vm194, %v205, %v207
    %v209 = vshll.u32 %v169, 8
    %v210 = vmul.u32.u64.compose %v209, %v208
    %v211 = vextract.low.u32 %v210
    %v212 = vextract.high.u32 %v210
    %v213 = vmul.u32.u64.compose %v209, %v204
    %v214 = vextract.low.u32 %v213
    %v215 = vextract.high.u32 %v213
    %v216 = vmul.u32 %v209, %v200
    %v217 = vadd.s32 %v212, %v214
    %vm218 = vc.u32 %v212, %v214
    %v219 = vadd.s32 %v215, 1
    %v220 = vsel %vm218, %v219, %v215
    %v221 = vadd.s32 %v216, %v220
    %v222 = vadd.s32 %v221, 536870912
    %v223 = vshrl.u32 %v222, 30
    %v224 = vshll.u32 %v223, 30
    %v225 = vsub.s32 %v221, %v224
    %vm226 = vcmp.lt.s32.totalorder %v225, 0
    %v227 = vsub.s32 0, %v225
    %v228 = vsel %vm226, %v227, %v225
    %v229 = vclz %v228
    %v230 = vsub.s32 %v229, 2
    %vm231 = vcmp.gt.s32.totalorder 0, %v230
    %v232 = vsel %vm231, 0, %v230
    %v233 = vsub.s32 32, %v232
    %v234 = vshll.u32 %v225, %v232
    %v235 = vshrl.u32 %v217, %v233
    %v236 = vor.u32 %v234, %v235
    %v237 = vsub.s32 4294967266, %v232
    %v238 = vadd.s32 %v237, 127
    %v239 = vshll.u32 %v238, 23
    %v240 = vor.u32 4788187, %v239
    %v241 = vand.u32 2147483647, %v240
    %v243 = vcvt.s32.f32 %v236
    %v244 = vmul.f32 %v243, %v241
    %v245 = vxor.u32 %v244, 2147483648
    %v246 = vsel %vm163, %v245, %v244
    %v247 = vsub.s32 4, %v223
    %v248 = vsel %vm163, %v247, %v223
    %v249 = vsel %vm162, %v56, %v246
    %v250 = vsel %vm162, 0, %v248
    %v251 = vcosq.f32.pop %v249
    %v252 = vsinq.f32.pop %v249
    %vm253 = vweird.f32 %v56
    %v254 = vadd.s32 %v250, 3
    %v255 = vand.u32 %v254, 3
    %vm256 = vcmp.lt.s32.totalorder %v255, 2
    %vm257 = vcmp.eq.s32.totalorder %v255, 0
    %v258 = vxor.u32 %v252, 2147483648
    %v259 = vsel %vm257, %v251, %v258
    %vm260 = vcmp.eq.s32.totalorder %v255, 2
    %v261 = vxor.u32 %v251, 2147483648
    %v262 = vsel %vm260, %v261, %v252
    %v263 = vsel %vm256, %v259, %v262
    %v264 = vsel %vm253, nan, %v263
    %v265 = vld [vmem:[#allocation2] sm:$0xff]
    %v266 = vld [vmem:[#allocation2 + $0x8] sm:$0xff]
    %v267 = vadd.f32 %v265, %v160
    %v268 = vadd.f32 %v266, %v264
    %269 = vst [vmem:[#allocation5] sm:$0xff] %v267
    %270 = vst [vmem:[#allocation5 + $0x8] sm:$0xff] %v268
    // Predicated region
    $region18: #{tpu_custom_call.1} parent=1 // pred_check
      _
    $region19: #{tpu_custom_call.1} parent=1 // pred_check_branch
      %272 = sbr.rel (0) target = $region21
    $region20: #{tpu_custom_call.1} parent=1 // pred_region
      %s274 = ssub.s32 256, 256
      %275 = vsyncadd [#allocation4], %s274
      %s276 = sshll.u32 [#allocation5], 4
      %s277 = int_to_ptr.vmem [resolvable:$true] %s276
      %282 = dma.vmem_to_hbm [thread:$0]  %s277, 256, %s3, [#allocation4], 128, 128, 8
    $region21: #{tpu_custom_call.1} parent=1 // pred_fallthru
      _
    // Predicated region
    $region22: #{tpu_custom_call.1} parent=1 // pred_check
      _
    $region23: #{tpu_custom_call.1} parent=1 // pred_check_branch
      %284 = sbr.rel (0) target = $region25
    $region24: #{tpu_custom_call.1} parent=1 // pred_region
      %285 = dma.done [#allocation4], 256
    $region25: #{tpu_custom_call.1} parent=1 // pred_fallthru
      _
    %286 = vsyncpa [#allocation3], 1
    %287 = vsyncpa [#allocation4], 1

</llo_original>
